<compile_context>
chip_gen: v5e
topology: v5e:2x2
jax: 0.10.0
libtpu: 0.0.40
codegen_flags: <defaults>
</compile_context>

<pallas_src>
import functools

import jax
import jax.numpy as jnp
from jax.experimental import pallas as pl
from jax.experimental.pallas import tpu as pltpu


_NEG_BIG = -1e30                    # f32 masked-logit constant
_OUT_PAD = 128                      # lane-dense padded width of the 48->2 linear
_APPROX_RECIP = True                # pl.reciprocal(approx=True) in softmax denom
_VMEM_LIMIT = 48 * 1024 * 1024      # fits v5e/v6e (128 MiB) and v7x (64 MiB)


def _round_up(x, m):
    return (x + m - 1) // m * m


def _leaky(x, slope):
    # max(x, slope*x) == LeakyReLU(x) for 0 < slope < 1 (drops one VALU op).
    return jnp.maximum(x, slope * x)


def _recip(x):
    return pl.reciprocal(x, approx=True) if _APPROX_RECIP else 1.0 / x


# ----------------------------------------------------------------------------
# Call 1: per-node work — fused feature linears + input linear + GAT1 proj.
# ----------------------------------------------------------------------------
def _preproc_kernel(x_ref, wf_ref, bf_ref, win_ref, bin_ref, w1_ref, h1_ref):
    f32 = jnp.float32
    x = jnp.dot(x_ref[...], wf_ref[...], preferred_element_type=f32)
    x = _leaky(x + bf_ref[...], 0.01)
    x = jnp.dot(x, win_ref[...], preferred_element_type=f32)
    x = _leaky(x + bin_ref[...], 0.01)
    h1_ref[...] = jnp.dot(x, w1_ref[...], preferred_element_type=f32)


# ----------------------------------------------------------------------------
# Call 2: GAT1 (heads=3) attention over a row tile of dst nodes + W2 proj.
# ----------------------------------------------------------------------------
def _gat1_kernel(adj_ref, h1_full_ref, h1_tile_ref, a1s_ref, a1d_ref,
                 b1_ref, w2_ref, h2_ref, *, heads, fh):
    f32 = jnp.float32
    mask = adj_ref[...] != 0                                       # (TM, N)
    h1f = h1_full_ref[...]                                         # (N, H*fh)
    h1_bf = h1f.astype(jnp.bfloat16)

    # Per-head scores via block-diagonal a_src/a_dst (two small matmuls).
    e_src_t = jnp.transpose(
        jnp.dot(h1f, a1s_ref[...], preferred_element_type=f32))    # (H, N)
    e_dst = jnp.dot(h1_tile_ref[...], a1d_ref[...],
                    preferred_element_type=f32)                    # (TM, H)

    # TODO(synk): for very large N move the head loop to a grid axis /
    # lax.fori_loop to bound per-head (TM, N) live ranges; at TM<=256 the
    # static 3-head unroll fits comfortably under the 48 MiB VMEM budget.
    outs = []
    for hh in range(heads):
        s = e_dst[:, hh:hh + 1] + e_src_t[hh:hh + 1, :]            # (TM, N)
        s = _leaky(s, 0.2)                                         # GATConv slope
        s = jnp.where(mask, s, _NEG_BIG)
        s = s - jnp.max(s, axis=1, keepdims=True)
        p = jnp.exp(s)                                             # masked -> 0
        alpha = p * _recip(jnp.sum(p, axis=1, keepdims=True))
        outs.append(jnp.dot(alpha.astype(jnp.bfloat16),            # bf16 MXU
                            h1_bf[:, hh * fh:(hh + 1) * fh],
                            preferred_element_type=f32))
    x1 = jnp.concatenate(outs, axis=1) + b1_ref[...]               # (TM, H*fh)
    # TODO(synk): F.dropout(p=0.3) after gat1 is training-mode only; eval here.
    h2_ref[...] = jnp.dot(x1, w2_ref[...], preferred_element_type=f32)


# ----------------------------------------------------------------------------
# Call 3: GAT2 (heads=1) attention over a row tile + output linears.
# ----------------------------------------------------------------------------
def _gat2_out_kernel(adj_ref, h2_full_ref, h2_tile_ref, a2s_ref, a2d_ref,
                     b2_ref, wo1_ref, bo1_ref, wo2_ref, bo2_ref, o_ref):
    f32 = jnp.float32
    mask = adj_ref[...] != 0                                       # (TM, N)
    h2f = h2_full_ref[...]                                         # (N, E)

    e_src_t = jnp.transpose(
        jnp.dot(h2f, a2s_ref[...], preferred_element_type=f32))    # (1, N)
    e_dst = jnp.dot(h2_tile_ref[...], a2d_ref[...],
                    preferred_element_type=f32)                    # (TM, 1)

    s = e_dst + e_src_t
    s = _leaky(s, 0.2)
    s = jnp.where(mask, s, _NEG_BIG)
    s = s - jnp.max(s, axis=1, keepdims=True)
    p = jnp.exp(s)
    alpha = p * _recip(jnp.sum(p, axis=1, keepdims=True))
    x2 = jnp.dot(alpha.astype(jnp.bfloat16), h2f.astype(jnp.bfloat16),
                 preferred_element_type=f32) + b2_ref[...]

    y = jnp.dot(x2, wo1_ref[...], preferred_element_type=f32)
    y = _leaky(y + bo1_ref[...], 0.01)
    y = jnp.dot(y, wo2_ref[...], preferred_element_type=f32) + bo2_ref[...]
    o_ref[...] = y.astype(o_ref.dtype)                             # (TM, 128)


# ----------------------------------------------------------------------------
# Host-side wrapper: packing, padding, three row-tiled pallas_calls.
# ----------------------------------------------------------------------------
def _att_block_diag(a):
    """(fh, heads) attention vectors -> block-diagonal (heads*fh, heads)."""
    fh, heads = a.shape
    bd = jnp.zeros((heads * fh, heads), jnp.float32)
    for h in range(heads):
        bd = bd.at[h * fh:(h + 1) * fh, h].set(a[:, h])
    return bd


def botgat2_forward(params, des, tweet, num_prop, cat_prop, adj, emb, tm=None):
    assert emb % 4 == 0 and emb % 3 == 0, "emb must be divisible by 3 and 4"
    n = des.shape[0]
    heads1, fh1 = 3, emb // 3

    n_pad = _round_up(max(n, 8), 128)
    if tm is None:
        tm = 256 if n_pad % 256 == 0 else 128
    assert n_pad % tm == 0
    grid = (n_pad // tm,)

    cp = pltpu.CompilerParams(dimension_semantics=("parallel",),
                              vmem_limit_bytes=_VMEM_LIMIT)
    row = lambda c: pl.BlockSpec((tm, c), lambda i: (i, 0))
    full = lambda shape: pl.BlockSpec(shape, lambda i: (0,) * len(shape))

    # --- host-side packing / padding ---
    x_in = jnp.concatenate([des, tweet, num_prop, cat_prop],
                           axis=1).astype(jnp.float32)
    din = x_in.shape[1]
    din_pad = _round_up(din, 128)                  # 135 -> 256: aligned K
    x_in = jnp.pad(x_in, ((0, n_pad - n), (0, din_pad - din)))

    # adj as int8 (4x smaller DMA / residency). Must contain self loops.
    adj_i8 = jnp.pad(adj.astype(jnp.int8), ((0, n_pad - n), (0, n_pad - n)))

    wf = jax.scipy.linalg.block_diag(
        params['des_w'], params['tweet_w'], params['num_w'], params['cat_w'])
    wf = jnp.pad(wf.astype(jnp.float32), ((0, din_pad - din), (0, 0)))
    bf = jnp.concatenate([params['des_b'], params['tweet_b'],
                          params['num_b'], params['cat_b']], axis=1)

    g1p, g2p = params['gat1'], params['gat2']
    a1s = _att_block_diag(g1p['a_src'])            # (3*fh1, 3)
    a1d = _att_block_diag(g1p['a_dst'])

    wo2 = jnp.zeros((emb, _OUT_PAD), jnp.float32).at[:, :2].set(params['out2_w'])
    bo2 = jnp.zeros((1, _OUT_PAD), jnp.float32).at[:, :2].set(params['out2_b'])

    # --- call 1: per-node linears + GAT1 projection -> h1 (n_pad, 3*fh1) ---
    h1 = pl.pallas_call(
        _preproc_kernel,
        grid=grid,
        in_specs=[row(din_pad), full(wf.shape), full(bf.shape),
                  full(params['in_w'].shape), full(params['in_b'].shape),
                  full(g1p['w'].shape)],
        out_specs=row(heads1 * fh1),
        out_shape=jax.ShapeDtypeStruct((n_pad, heads1 * fh1), jnp.float32),
        compiler_params=cp,
    )(x_in, wf, bf, params['in_w'], params['in_b'], g1p['w'])

    # --- call 2: GAT1 attention (row-tiled) + GAT2 input proj -> h2 ---
    flops2 = (heads1 * 2 * n_pad * n_pad * fh1            # aggregation
              + 4 * n_pad * heads1 * fh1 * heads1          # e_src / e_dst
              + 2 * n_pad * emb * emb)                     # W2 projection
    ce2 = pl.CostEstimate(flops=flops2,
                          transcendentals=heads1 * n_pad * n_pad,
                          bytes_accessed=n_pad * n_pad + 4 * 4 * n_pad * emb)
    h2 = pl.pallas_call(
        functools.partial(_gat1_kernel, heads=heads1, fh=fh1),
        grid=grid,
        in_specs=[row(n_pad),                     # adj tile (int8)
                  full((n_pad, heads1 * fh1)),    # h1 full (sources)
                  row(heads1 * fh1),              # h1 tile (destinations)
                  full(a1s.shape), full(a1d.shape),
                  full(g1p['b'].shape), full(g2p['w'].shape)],
        out_specs=row(emb),
        out_shape=jax.ShapeDtypeStruct((n_pad, emb), jnp.float32),
        compiler_params=cp,
        cost_estimate=ce2,
    )(adj_i8, h1, h1, a1s, a1d, g1p['b'], g2p['w'])

    # --- call 3: GAT2 attention (row-tiled) + output linears -> logits ---
    flops3 = (2 * n_pad * n_pad * emb + 4 * n_pad * emb
              + 2 * n_pad * emb * emb + 2 * n_pad * emb * _OUT_PAD)
    ce3 = pl.CostEstimate(flops=flops3,
                          transcendentals=n_pad * n_pad,
                          bytes_accessed=n_pad * n_pad
                          + 4 * (3 * n_pad * emb + n_pad * _OUT_PAD))
    out = pl.pallas_call(
        _gat2_out_kernel,
        grid=grid,
        in_specs=[row(n_pad),                     # adj tile (int8)
                  full((n_pad, emb)),             # h2 full (sources)
                  row(emb),                       # h2 tile (destinations)
                  full(g2p['a_src'].shape), full(g2p['a_dst'].shape),
                  full(g2p['b'].shape),
                  full(params['out1_w'].shape), full(params['out1_b'].shape),
                  full(wo2.shape), full(bo2.shape)],
        out_specs=row(_OUT_PAD),
        out_shape=jax.ShapeDtypeStruct((n_pad, _OUT_PAD), jnp.float32),
        compiler_params=cp,
        cost_estimate=ce3,
    )(adj_i8, h2, h2, g2p['a_src'], g2p['a_dst'], g2p['b'],
      params['out1_w'], params['out1_b'], wo2, bo2)

    return out[:n, :2]


# ----------------------------------------------------------------------------
# Parameter init + graph densification (host-side glue)
# ----------------------------------------------------------------------------
def init_params(key, des_size, tweet_size, num_prop_size, cat_prop_size, emb):
    q = emb // 4
    g1 = emb // 3

    def dense(k, din, dout):
        kw, kb = jax.random.split(k)
        return (0.1 * jax.random.normal(kw, (din, dout), jnp.float32),
                0.1 * jax.random.normal(kb, (1, dout), jnp.float32))

    def gat(k, din, fh, heads):
        kw, ka, kd, kb = jax.random.split(k, 4)
        return dict(
            w=0.1 * jax.random.normal(kw, (din, heads * fh), jnp.float32),
            a_src=0.1 * jax.random.normal(ka, (fh, heads), jnp.float32),
            a_dst=0.1 * jax.random.normal(kd, (fh, heads), jnp.float32),
            b=0.1 * jax.random.normal(kb, (1, heads * fh), jnp.float32),
        )

    ks = jax.random.split(key, 9)
    p = {}
    p['des_w'], p['des_b'] = dense(ks[0], des_size, q)
    p['tweet_w'], p['tweet_b'] = dense(ks[1], tweet_size, q)
    p['num_w'], p['num_b'] = dense(ks[2], num_prop_size, q)
    p['cat_w'], p['cat_b'] = dense(ks[3], cat_prop_size, q)
    p['in_w'], p['in_b'] = dense(ks[4], emb, emb)
    p['gat1'] = gat(ks[5], emb, g1, 3)
    p['gat2'] = gat(ks[6], 3 * g1, emb, 1)
    p['out1_w'], p['out1_b'] = dense(ks[7], emb, emb)
    p['out2_w'], p['out2_b'] = dense(ks[8], emb, 2)
    return p


def edge_index_to_adj(edge_index, n):
    # adj[dst, src] = 1 ; GATConv adds self loops by default (required for the
    # masked-softmax stability contract).
    src, dst = edge_index[0], edge_index[1]
    adj = jnp.zeros((n, n), jnp.int8).at[dst, src].set(1)
    adj = adj.at[jnp.arange(n), jnp.arange(n)].set(1)
    return adj


# ----------------------------------------------------------------------------
# Pure-JAX f32 reference of the same math (sanity check for the kernels)
# ----------------------------------------------------------------------------
def _reference_forward(params, des, tweet, num_prop, cat_prop, adj, emb):
    g1 = emb // 3

    def lin(x, w, b, leaky):
        y = x @ w + b
        return jnp.where(y > 0, y, 0.01 * y) if leaky else y

    def gat(x, g, heads, fh):
        h_all = x @ g['w']
        outs = []
        for hh in range(heads):
            h = h_all[:, hh * fh:(hh + 1) * fh]
            es = h @ g['a_src'][:, hh:hh + 1]
            ed = h @ g['a_dst'][:, hh:hh + 1]
            s = ed + es.T
            s = jnp.where(s > 0, s, 0.2 * s)
            s = jnp.where(adj > 0, s, -1e30)
            s = s - jnp.max(s, axis=1, keepdims=True)
            p = jnp.exp(s)
            alpha = p / jnp.sum(p, axis=1, keepdims=True)
            outs.append(alpha @ h)
        return (jnp.concatenate(outs, axis=1) if heads > 1 else outs[0]) + g['b']

    x = jnp.concatenate([
        lin(des, params['des_w'], params['des_b'], True),
        lin(tweet, params['tweet_w'], params['tweet_b'], True),
        lin(num_prop, params['num_w'], params['num_b'], True),
        lin(cat_prop, params['cat_w'], params['cat_b'], True)], axis=1)
    x = lin(x, params['in_w'], params['in_b'], True)
    x = gat(x, params['gat1'], 3, g1)
    x = gat(x, params['gat2'], 1, emb)
    x = lin(x, params['out1_w'], params['out1_b'], True)
    return lin(x, params['out2_w'], params['out2_b'], False)


if __name__ == "__main__":
    # Small, shape-consistent configuration.
    N_NODES = 8
    DES_SIZE = 64
    TWEET_SIZE = 64
    NUM_PROP_SIZE = 4
    CAT_PROP_SIZE = 3
    EMB = 48          # divisible by 4 (feature split) and by 3 (gat1 heads)

    key = jax.random.PRNGKey(0)
    k_p, k_d, k_t, k_n, k_c = jax.random.split(key, 5)

    params = init_params(k_p, DES_SIZE, TWEET_SIZE, NUM_PROP_SIZE,
                         CAT_PROP_SIZE, EMB)

    des = jax.random.normal(k_d, (N_NODES, DES_SIZE), jnp.float32)
    tweet = jax.random.normal(k_t, (N_NODES, TWEET_SIZE), jnp.float32)
    num_prop = jax.random.normal(k_n, (N_NODES, NUM_PROP_SIZE), jnp.float32)
    cat_prop = jax.random.normal(k_c, (N_NODES, CAT_PROP_SIZE), jnp.float32)

    # Deterministic edge_index (PyG format: [2, E], row0 = src, row1 = dst).
    src = jnp.array([0, 1, 2, 3, 4, 5, 6, 7, 0, 2, 4, 6], jnp.int32)
    dst = jnp.array([1, 2, 3, 4, 5, 6, 7, 0, 4, 6, 0, 2], jnp.int32)
    edge_index = jnp.stack([src, dst])
    adj = edge_index_to_adj(edge_index, N_NODES)

    out = botgat2_forward(params, des, tweet, num_prop, cat_prop, adj, EMB)
    out = jax.block_until_ready(out)

    ref = _reference_forward(params, des, tweet, num_prop, cat_prop, adj, EMB)
    assert out.shape == (N_NODES, 2), out.shape
    assert jnp.all(jnp.isfinite(out))
    # bf16 aggregation + approx reciprocal in the softmax -> loose tolerance
    assert jnp.allclose(out, ref, rtol=5e-2, atol=5e-2), (out, ref)
    print("KERNEL_OK")
</pallas_src>

<mosaic_0001>
module attributes {stable_mosaic.version = 11 : i64} {
  func.func @_preproc_kernel(%arg0: i32, %arg1: memref<128x256xf32, #tpu.memory_space<vmem>>, %arg2: memref<256x48xf32, #tpu.memory_space<vmem>>, %arg3: memref<1x48xf32, #tpu.memory_space<vmem>>, %arg4: memref<48x48xf32, #tpu.memory_space<vmem>>, %arg5: memref<1x48xf32, #tpu.memory_space<vmem>>, %arg6: memref<48x48xf32, #tpu.memory_space<vmem>>, %arg7: memref<128x48xf32, #tpu.memory_space<vmem>>) attributes {dimension_semantics = [#tpu.dimension_semantics<parallel>], iteration_bounds = array<i64: 1>, scalar_prefetch = 0 : i64, scratch_operands = 0 : i64, tpu.core_type = #tpu.core_type<tc>, window_params = [{transform_indices = @transform_0, window_bounds = array<i64: 128, 256>}, {pipeline_mode = #tpu.pipeline_mode<synchronous>, transform_indices = @transform_1, window_bounds = array<i64: 256, 48>}, {pipeline_mode = #tpu.pipeline_mode<synchronous>, transform_indices = @transform_2, window_bounds = array<i64: 1, 48>}, {pipeline_mode = #tpu.pipeline_mode<synchronous>, transform_indices = @transform_3, window_bounds = array<i64: 48, 48>}, {pipeline_mode = #tpu.pipeline_mode<synchronous>, transform_indices = @transform_4, window_bounds = array<i64: 1, 48>}, {pipeline_mode = #tpu.pipeline_mode<synchronous>, transform_indices = @transform_5, window_bounds = array<i64: 48, 48>}, {transform_indices = @transform_6, window_bounds = array<i64: 128, 48>}]} {
    %c0 = arith.constant 0 : index
    %c0_0 = arith.constant 0 : index
    %0 = vector.load %arg1[%c0, %c0_0] : memref<128x256xf32, #tpu.memory_space<vmem>>, vector<128x256xf32>
    %c0_1 = arith.constant 0 : index
    %c0_2 = arith.constant 0 : index
    %1 = vector.load %arg2[%c0_1, %c0_2] : memref<256x48xf32, #tpu.memory_space<vmem>>, vector<256x48xf32>
    %cst = arith.constant dense<0.000000e+00> : vector<128x48xf32>
    %2 = tpu.matmul %0, %1, %cst {dimension_numbers = #tpu.dot_dimension_numbers<[1], [0], [0], [1], [0, 0, 1, 1], [], []>} : vector<128x256xf32>, vector<256x48xf32>, vector<128x48xf32> -> vector<128x48xf32>
    %c0_3 = arith.constant 0 : index
    %c0_4 = arith.constant 0 : index
    %3 = vector.load %arg3[%c0_3, %c0_4] : memref<1x48xf32, #tpu.memory_space<vmem>>, vector<1x48xf32>
    %4 = vector.broadcast %3 : vector<1x48xf32> to vector<128x48xf32>
    %5 = arith.addf %2, %4 : vector<128x48xf32>
    %cst_5 = arith.constant 0.00999999977 : f32
    %6 = vector.broadcast %cst_5 : f32 to vector<128x48xf32>
    %7 = arith.mulf %6, %5 : vector<128x48xf32>
    %8 = arith.maximumf %5, %7 : vector<128x48xf32>
    %c0_6 = arith.constant 0 : index
    %c0_7 = arith.constant 0 : index
    %9 = vector.load %arg4[%c0_6, %c0_7] : memref<48x48xf32, #tpu.memory_space<vmem>>, vector<48x48xf32>
    %cst_8 = arith.constant dense<0.000000e+00> : vector<128x48xf32>
    %10 = tpu.matmul %8, %9, %cst_8 {dimension_numbers = #tpu.dot_dimension_numbers<[1], [0], [0], [1], [0, 0, 1, 1], [], []>} : vector<128x48xf32>, vector<48x48xf32>, vector<128x48xf32> -> vector<128x48xf32>
    %c0_9 = arith.constant 0 : index
    %c0_10 = arith.constant 0 : index
    %11 = vector.load %arg5[%c0_9, %c0_10] : memref<1x48xf32, #tpu.memory_space<vmem>>, vector<1x48xf32>
    %12 = vector.broadcast %11 : vector<1x48xf32> to vector<128x48xf32>
    %13 = arith.addf %10, %12 : vector<128x48xf32>
    %cst_11 = arith.constant 0.00999999977 : f32
    %14 = vector.broadcast %cst_11 : f32 to vector<128x48xf32>
    %15 = arith.mulf %14, %13 : vector<128x48xf32>
    %16 = arith.maximumf %13, %15 : vector<128x48xf32>
    %c0_12 = arith.constant 0 : index
    %c0_13 = arith.constant 0 : index
    %17 = vector.load %arg6[%c0_12, %c0_13] : memref<48x48xf32, #tpu.memory_space<vmem>>, vector<48x48xf32>
    %cst_14 = arith.constant dense<0.000000e+00> : vector<128x48xf32>
    %18 = tpu.matmul %16, %17, %cst_14 {dimension_numbers = #tpu.dot_dimension_numbers<[1], [0], [0], [1], [0, 0, 1, 1], [], []>} : vector<128x48xf32>, vector<48x48xf32>, vector<128x48xf32> -> vector<128x48xf32>
    %c0_15 = arith.constant 0 : index
    %c0_16 = arith.constant 0 : index
    %19 = vector.load %arg7[%c0_15, %c0_16] : memref<128x48xf32, #tpu.memory_space<vmem>>, vector<128x48xf32>
    tpu.vector_store %arg7[%c0_15, %c0_16], %18 {strides = array<i32>} : memref<128x48xf32, #tpu.memory_space<vmem>>, vector<128x48xf32>,
    return
  }
  func.func @transform_0(%arg0: i32) -> (i32, i32) {
    %c0_i32 = arith.constant 0 : i32
    %c0_i32_0 = arith.constant 0 : i32
    return %arg0, %c0_i32 : i32, i32
  }
  func.func @transform_1(%arg0: i32) -> (i32, i32) {
    %c0_i32 = arith.constant 0 : i32
    %c0_i32_0 = arith.constant 0 : i32
    %c0_i32_1 = arith.constant 0 : i32
    return %c0_i32, %c0_i32_0 : i32, i32
  }
  func.func @transform_2(%arg0: i32) -> (i32, i32) {
    %c0_i32 = arith.constant 0 : i32
    %c0_i32_0 = arith.constant 0 : i32
    %c0_i32_1 = arith.constant 0 : i32
    return %c0_i32, %c0_i32_0 : i32, i32
  }
  func.func @transform_3(%arg0: i32) -> (i32, i32) {
    %c0_i32 = arith.constant 0 : i32
    %c0_i32_0 = arith.constant 0 : i32
    %c0_i32_1 = arith.constant 0 : i32
    return %c0_i32, %c0_i32_0 : i32, i32
  }
  func.func @transform_4(%arg0: i32) -> (i32, i32) {
    %c0_i32 = arith.constant 0 : i32
    %c0_i32_0 = arith.constant 0 : i32
    %c0_i32_1 = arith.constant 0 : i32
    return %c0_i32, %c0_i32_0 : i32, i32
  }
  func.func @transform_5(%arg0: i32) -> (i32, i32) {
    %c0_i32 = arith.constant 0 : i32
    %c0_i32_0 = arith.constant 0 : i32
    %c0_i32_1 = arith.constant 0 : i32
    return %c0_i32, %c0_i32_0 : i32, i32
  }
  func.func @transform_6(%arg0: i32) -> (i32, i32) {
    %c0_i32 = arith.constant 0 : i32
    %c0_i32_0 = arith.constant 0 : i32
    return %arg0, %c0_i32 : i32, i32
  }
}

</mosaic_0001>

<llo_original>
// kernel: tpu_custom_call.1
$region0: #{tpu_custom_call.1}
  #allocation0 [shape = 'u32[]', space=smem, size = 0x4, offset = 0x4, fixed_abs, tag = 'smem constant byte address 0x4 - core index']
  #allocation1 [shape = 'u32[72,128]{1,0:T(1,128)}', space=vmem, size = 0x9000, scoped, tag = 'internal scratch']
  %s0 = inlined_call_operand.vmem [shape: f32[128,256], index: 0, kind: input, shape index: {}]
  %s1 = inlined_call_operand.vmem [shape: f32[256,48], index: 1, kind: input, shape index: {}]
  %s2 = inlined_call_operand.hbm [shape: f32[1,48], index: 2, kind: input, shape index: {}]
  %s3 = inlined_call_operand.vmem [shape: f32[48,48], index: 3, kind: input, shape index: {}]
  %s4 = inlined_call_operand.vmem [shape: f32[1,48], index: 4, kind: input, shape index: {}]
  %s5 = inlined_call_operand.vmem [shape: f32[48,48], index: 5, kind: input, shape index: {}]
  %s6 = inlined_call_operand.vmem [shape: f32[128,48], index: 6, kind: output, shape index: {}]
  %s7 = sld [smem:[#allocation0]]
  $region38: #{tpu_custom_call.1} parent=0
    _
  %s9 = ssub.s32 1, %s7
  %s10 = scalar_select 0, %s9, %s7
  $region1: #{tpu_custom_call.1} parent=0
    #allocation2 [shape = 'u8[512]{0}', space=vmem, size = 0x400, scoped, tag = 'input window, operand 2, single buffered']
    #allocation3 [shape = 's32[1]{0}', space=sflag, size = 0x4, scoped, tag = 'scoped memory for tpu_custom_call.1']
    %11 = vsyncpa [#allocation3], 0
    // Predicated region
    $region2: #{tpu_custom_call.1} parent=1 // pred_check
      _
    $region3: #{tpu_custom_call.1} parent=1 // pred_check_branch
      %13 = sbr.rel (0) target = $region5
    $region4: #{tpu_custom_call.1} parent=1 // pred_region
      _
    $region5: #{tpu_custom_call.1} parent=1 // pred_fallthru
      _
    // Predicated region
    $region6: #{tpu_custom_call.1} parent=1 // pred_check
      _
    $region7: #{tpu_custom_call.1} parent=1 // pred_check_branch
      %15 = sbr.rel (0) target = $region9
    $region8: #{tpu_custom_call.1} parent=1 // pred_region
      _
    $region9: #{tpu_custom_call.1} parent=1 // pred_fallthru
      _
    // Predicated region
    $region10: #{tpu_custom_call.1} parent=1 // pred_check
      _
    $region11: #{tpu_custom_call.1} parent=1 // pred_check_branch
      %17 = sbr.rel (0) target = $region13
    $region12: #{tpu_custom_call.1} parent=1 // pred_region
      %19 = vsyncadd [#allocation3], 0
      %s21 = sshll.u32 %s2, 4
      %s22 = int_to_ptr.hbm [resolvable:$true] %s21
      %s23 = sshll.u32 [#allocation2], 4
      %s24 = int_to_ptr.vmem [resolvable:$true] %s23
      %26 = dma.hbm_to_vmem [thread:$0]  %s22, 16, %s24, [#allocation3]
    $region13: #{tpu_custom_call.1} parent=1 // pred_fallthru
      _
    // Predicated region
    $region14: #{tpu_custom_call.1} parent=1 // pred_check
      _
    $region15: #{tpu_custom_call.1} parent=1 // pred_check_branch
      %28 = sbr.rel (0) target = $region17
    $region16: #{tpu_custom_call.1} parent=1 // pred_region
      _
    $region17: #{tpu_custom_call.1} parent=1 // pred_fallthru
      _
    // Predicated region
    $region18: #{tpu_custom_call.1} parent=1 // pred_check
      _
    $region19: #{tpu_custom_call.1} parent=1 // pred_check_branch
      %30 = sbr.rel (0) target = $region21
    $region20: #{tpu_custom_call.1} parent=1 // pred_region
      _
    $region21: #{tpu_custom_call.1} parent=1 // pred_fallthru
      _
    // Predicated region
    $region22: #{tpu_custom_call.1} parent=1 // pred_check
      _
    $region23: #{tpu_custom_call.1} parent=1 // pred_check_branch
      %32 = sbr.rel (0) target = $region25
    $region24: #{tpu_custom_call.1} parent=1 // pred_region
      _
    $region25: #{tpu_custom_call.1} parent=1 // pred_fallthru
      _
    // Predicated region
    $region26: #{tpu_custom_call.1} parent=1 // pred_check
      _
    $region27: #{tpu_custom_call.1} parent=1 // pred_check_branch
      %34 = sbr.rel (0) target = $region29
    $region28: #{tpu_custom_call.1} parent=1 // pred_region
      %36 = dma.done [#allocation3], 16
    $region29: #{tpu_custom_call.1} parent=1 // pred_fallthru
      _
    %v37 = vld [vmem:[%s0] sm:$0xff]
    %v38 = vld [vmem:[%s0 + $0x8] sm:$0xff]
    %v39 = vld [vmem:[%s0 + $0x10] sm:$0xff]
    %v40 = vld [vmem:[%s0 + $0x18] sm:$0xff]
    %v41 = vld [vmem:[%s0 + $0x20] sm:$0xff]
    %v42 = vld [vmem:[%s0 + $0x28] sm:$0xff]
    %v43 = vld [vmem:[%s0 + $0x30] sm:$0xff]
    %v44 = vld [vmem:[%s0 + $0x38] sm:$0xff]
    %v45 = vld [vmem:[%s0 + $0x40] sm:$0xff]
    %v46 = vld [vmem:[%s0 + $0x48] sm:$0xff]
    %v47 = vld [vmem:[%s0 + $0x50] sm:$0xff]
    %v48 = vld [vmem:[%s0 + $0x58] sm:$0xff]
    %v49 = vld [vmem:[%s0 + $0x60] sm:$0xff]
    %v50 = vld [vmem:[%s0 + $0x68] sm:$0xff]
    %v51 = vld [vmem:[%s0 + $0x70] sm:$0xff]
    %v52 = vld [vmem:[%s0 + $0x78] sm:$0xff]
    %v53 = vld [vmem:[%s0 + $0x80] sm:$0xff]
    %v54 = vld [vmem:[%s0 + $0x88] sm:$0xff]
    %v55 = vld [vmem:[%s0 + $0x90] sm:$0xff]
    %v56 = vld [vmem:[%s0 + $0x98] sm:$0xff]
    %v57 = vld [vmem:[%s0 + $0xa0] sm:$0xff]
    %v58 = vld [vmem:[%s0 + $0xa8] sm:$0xff]
    %v59 = vld [vmem:[%s0 + $0xb0] sm:$0xff]
    %v60 = vld [vmem:[%s0 + $0xb8] sm:$0xff]
    %v61 = vld [vmem:[%s0 + $0xc0] sm:$0xff]
    %v62 = vld [vmem:[%s0 + $0xc8] sm:$0xff]
    %v63 = vld [vmem:[%s0 + $0xd0] sm:$0xff]
    %v64 = vld [vmem:[%s0 + $0xd8] sm:$0xff]
    %v65 = vld [vmem:[%s0 + $0xe0] sm:$0xff]
    %v66 = vld [vmem:[%s0 + $0xe8] sm:$0xff]
    %v67 = vld [vmem:[%s0 + $0xf0] sm:$0xff]
    %v68 = vld [vmem:[%s0 + $0xf8] sm:$0xff]
    %v69 = vld [vmem:[%s1] sm:$0xff]
    %v70 = vld [vmem:[%s1 + $0x8] sm:$0xff]
    %v71 = vld [vmem:[%s1 + $0x10] sm:$0xff]
    %v72 = vld [vmem:[%s1 + $0x18] sm:$0xff]
    %v73 = vld [vmem:[%s1 + $0x20] sm:$0xff]
    %v74 = vld [vmem:[%s1 + $0x28] sm:$0xff]
    %v75 = vld [vmem:[%s1 + $0x30] sm:$0xff]
    %v76 = vld [vmem:[%s1 + $0x38] sm:$0xff]
    %v77 = vld [vmem:[%s1 + $0x40] sm:$0xff]
    %v78 = vld [vmem:[%s1 + $0x48] sm:$0xff]
    %v79 = vld [vmem:[%s1 + $0x50] sm:$0xff]
    %v80 = vld [vmem:[%s1 + $0x58] sm:$0xff]
    %v81 = vld [vmem:[%s1 + $0x60] sm:$0xff]
    %v82 = vld [vmem:[%s1 + $0x68] sm:$0xff]
    %v83 = vld [vmem:[%s1 + $0x70] sm:$0xff]
    %v84 = vld [vmem:[%s1 + $0x78] sm:$0xff]
    %v85 = vld [vmem:[%s1 + $0x80] sm:$0xff]
    %v86 = vld [vmem:[%s1 + $0x88] sm:$0xff]
    %v87 = vld [vmem:[%s1 + $0x90] sm:$0xff]
    %v88 = vld [vmem:[%s1 + $0x98] sm:$0xff]
    %v89 = vld [vmem:[%s1 + $0xa0] sm:$0xff]
    %v90 = vld [vmem:[%s1 + $0xa8] sm:$0xff]
    %v91 = vld [vmem:[%s1 + $0xb0] sm:$0xff]
    %v92 = vld [vmem:[%s1 + $0xb8] sm:$0xff]
    %v93 = vld [vmem:[%s1 + $0xc0] sm:$0xff]
    %v94 = vld [vmem:[%s1 + $0xc8] sm:$0xff]
    %v95 = vld [vmem:[%s1 + $0xd0] sm:$0xff]
    %v96 = vld [vmem:[%s1 + $0xd8] sm:$0xff]
    %v97 = vld [vmem:[%s1 + $0xe0] sm:$0xff]
    %v98 = vld [vmem:[%s1 + $0xe8] sm:$0xff]
    %v99 = vld [vmem:[%s1 + $0xf0] sm:$0xff]
    %v100 = vld [vmem:[%s1 + $0xf8] sm:$0xff]
    %v101 = vld [vmem:[#allocation2] sm:$0x1]
    %v103 = vperm.slane %v101, 0
    %105 = vmatpush.msra.mxu0 %v84
    %106 = vmatpush.msra.mxu0 %v83
    %107 = vmatpush.msra.mxu0 %v82
    %108 = vmatpush.msra.mxu0 %v81
    %109 = vmatpush.msra.mxu0 %v80
    %110 = vmatpush.msra.mxu0 %v79
    %111 = vmatpush.msra.mxu0 %v78
    %112 = vmatpush.msra.mxu0 %v77
    %113 = vmatpush.msra.mxu0 %v76
    %114 = vmatpush.msra.mxu0 %v75
    %115 = vmatpush.msra.mxu0 %v74
    %116 = vmatpush.msra.mxu0 %v73
    %117 = vmatpush.msra.mxu0 %v72
    %118 = vmatpush.msra.mxu0 %v71
    %119 = vmatpush.msra.mxu0 %v70
    %120 = vmatpush.msra.mxu0 %v69
    %121 = vmatmul.f32.gmra.mxu0 %v37
    %v122 = vpop.f32.mrf.mxu0
    %v123 = vadd.f32 %v103, %v122
    %124 = vmatmul.f32.gmra.mxu0 %v39
    %v125 = vpop.f32.mrf.mxu0
    %v126 = vadd.f32 %v103, %v125
    %127 = vmatmul.f32.gmra.mxu0 %v41
    %v128 = vpop.f32.mrf.mxu0
    %v129 = vadd.f32 %v103, %v128
    %130 = vmatmul.f32.gmra.mxu0 %v43
    %v131 = vpop.f32.mrf.mxu0
    %v132 = vadd.f32 %v103, %v131
    %133 = vmatmul.f32.gmra.mxu0 %v45
    %v134 = vpop.f32.mrf.mxu0
    %v135 = vadd.f32 %v103, %v134
    %136 = vmatmul.f32.gmra.mxu0 %v47
    %v137 = vpop.f32.mrf.mxu0
    %v138 = vadd.f32 %v103, %v137
    %139 = vmatmul.f32.gmra.mxu0 %v49
    %v140 = vpop.f32.mrf.mxu0
    %v141 = vadd.f32 %v103, %v140
    %142 = vmatmul.f32.gmra.mxu0 %v51
    %v143 = vpop.f32.mrf.mxu0
    %v144 = vadd.f32 %v103, %v143
    %145 = vmatmul.f32.gmra.mxu0 %v53
    %v146 = vpop.f32.mrf.mxu0
    %v147 = vadd.f32 %v103, %v146
    %148 = vmatmul.f32.gmra.mxu0 %v55
    %v149 = vpop.f32.mrf.mxu0
    %v150 = vadd.f32 %v103, %v149
    %151 = vmatmul.f32.gmra.mxu0 %v57
    %v152 = vpop.f32.mrf.mxu0
    %v153 = vadd.f32 %v103, %v152
    %154 = vmatmul.f32.gmra.mxu0 %v59
    %v155 = vpop.f32.mrf.mxu0
    %v156 = vadd.f32 %v103, %v155
    %157 = vmatmul.f32.gmra.mxu0 %v61
    %v158 = vpop.f32.mrf.mxu0
    %v159 = vadd.f32 %v103, %v158
    %160 = vmatmul.f32.gmra.mxu0 %v63
    %v161 = vpop.f32.mrf.mxu0
    %v162 = vadd.f32 %v103, %v161
    %163 = vmatmul.f32.gmra.mxu0 %v65
    %v164 = vpop.f32.mrf.mxu0
    %v165 = vadd.f32 %v103, %v164
    %166 = vmatmul.f32.gmra.mxu0 %v67
    %v167 = vpop.f32.mrf.mxu0
    %v168 = vadd.f32 %v103, %v167
    %169 = vdwg.mxu0
    %170 = vmatpush.msra.mxu0 %v100
    %171 = vmatpush.msra.mxu0 %v99
    %172 = vmatpush.msra.mxu0 %v98
    %173 = vmatpush.msra.mxu0 %v97
    %174 = vmatpush.msra.mxu0 %v96
    %175 = vmatpush.msra.mxu0 %v95
    %176 = vmatpush.msra.mxu0 %v94
    %177 = vmatpush.msra.mxu0 %v93
    %178 = vmatpush.msra.mxu0 %v92
    %179 = vmatpush.msra.mxu0 %v91
    %180 = vmatpush.msra.mxu0 %v90
    %181 = vmatpush.msra.mxu0 %v89
    %182 = vmatpush.msra.mxu0 %v88
    %183 = vmatpush.msra.mxu0 %v87
    %184 = vmatpush.msra.mxu0 %v86
    %185 = vmatpush.msra.mxu0 %v85
    %186 = vmatmul.f32.gmra.mxu0 %v38
    %v187 = vpop.f32.mrf.mxu0
    %v188 = vadd.f32 %v123, %v187
    %189 = vmatmul.f32.gmra.mxu0 %v40
    %v190 = vpop.f32.mrf.mxu0
    %v191 = vadd.f32 %v126, %v190
    %192 = vmatmul.f32.gmra.mxu0 %v42
    %v193 = vpop.f32.mrf.mxu0
    %v194 = vadd.f32 %v129, %v193
    %195 = vmatmul.f32.gmra.mxu0 %v44
    %v196 = vpop.f32.mrf.mxu0
    %v197 = vadd.f32 %v132, %v196
    %198 = vmatmul.f32.gmra.mxu0 %v46
    %v199 = vpop.f32.mrf.mxu0
    %v200 = vadd.f32 %v135, %v199
    %201 = vmatmul.f32.gmra.mxu0 %v48
    %v202 = vpop.f32.mrf.mxu0
    %v203 = vadd.f32 %v138, %v202
    %204 = vmatmul.f32.gmra.mxu0 %v50
    %v205 = vpop.f32.mrf.mxu0
    %v206 = vadd.f32 %v141, %v205
    %207 = vmatmul.f32.gmra.mxu0 %v52
    %v208 = vpop.f32.mrf.mxu0
    %v209 = vadd.f32 %v144, %v208
    %210 = vmatmul.f32.gmra.mxu0 %v54
    %v211 = vpop.f32.mrf.mxu0
    %v212 = vadd.f32 %v147, %v211
    %213 = vmatmul.f32.gmra.mxu0 %v56
    %v214 = vpop.f32.mrf.mxu0
    %v215 = vadd.f32 %v150, %v214
    %216 = vmatmul.f32.gmra.mxu0 %v58
    %v217 = vpop.f32.mrf.mxu0
    %v218 = vadd.f32 %v153, %v217
    %219 = vmatmul.f32.gmra.mxu0 %v60
    %v220 = vpop.f32.mrf.mxu0
    %v221 = vadd.f32 %v156, %v220
    %222 = vmatmul.f32.gmra.mxu0 %v62
    %v223 = vpop.f32.mrf.mxu0
    %v224 = vadd.f32 %v159, %v223
    %225 = vmatmul.f32.gmra.mxu0 %v64
    %v226 = vpop.f32.mrf.mxu0
    %v227 = vadd.f32 %v162, %v226
    %228 = vmatmul.f32.gmra.mxu0 %v66
    %v229 = vpop.f32.mrf.mxu0
    %v230 = vadd.f32 %v165, %v229
    %231 = vmatmul.f32.gmra.mxu0 %v68
    %v232 = vpop.f32.mrf.mxu0
    %v233 = vadd.f32 %v168, %v232
    %234 = vdwg.mxu0
    %v235 = vmul.f32 %v188, 0.01
    %v236 = vmul.f32 %v191, 0.01
    %v237 = vmul.f32 %v194, 0.01
    %v238 = vmul.f32 %v197, 0.01
    %v239 = vmul.f32 %v200, 0.01
    %v240 = vmul.f32 %v203, 0.01
    %v241 = vmul.f32 %v206, 0.01
    %v242 = vmul.f32 %v209, 0.01
    %v243 = vmul.f32 %v212, 0.01
    %v244 = vmul.f32 %v215, 0.01
    %v245 = vmul.f32 %v218, 0.01
    %v246 = vmul.f32 %v221, 0.01
    %v247 = vmul.f32 %v224, 0.01
    %v248 = vmul.f32 %v227, 0.01
    %v249 = vmul.f32 %v230, 0.01
    %v250 = vmul.f32 %v233, 0.01
    %v251 = vmax.f32 %v188, %v235
    %v252 = vmax.f32 %v191, %v236
    %v253 = vmax.f32 %v194, %v237
    %v254 = vmax.f32 %v197, %v238
    %v255 = vmax.f32 %v200, %v239
    %v256 = vmax.f32 %v203, %v240
    %v257 = vmax.f32 %v206, %v241
    %v258 = vmax.f32 %v209, %v242
    %v259 = vmax.f32 %v212, %v243
    %v260 = vmax.f32 %v215, %v244
    %v261 = vmax.f32 %v218, %v245
    %v262 = vmax.f32 %v221, %v246
    %v263 = vmax.f32 %v224, %v247
    %v264 = vmax.f32 %v227, %v248
    %v265 = vmax.f32 %v230, %v249
    %v266 = vmax.f32 %v233, %v250
    %v267 = vld [vmem:[%s3] sm:$0xff]
    %v268 = vld [vmem:[%s3 + $0x8] sm:$0xff]
    %v269 = vld [vmem:[%s3 + $0x10] sm:$0xff]
    %v270 = vld [vmem:[%s3 + $0x18] sm:$0xff]
    %v271 = vld [vmem:[%s3 + $0x20] sm:$0xff]
    %v272 = vld [vmem:[%s3 + $0x28] sm:$0xff]
    %v273 = vld [vmem:[%s4] sm:$0x1]
    %v275 = vperm.slane %v273, 0
    %vm277 = vcmask 392192
    %v279 = vsel %vm277, %v251, 0
    %v282 = vsel %vm277, %v252, 0
    %v285 = vsel %vm277, %v253, 0
    %v288 = vsel %vm277, %v254, 0
    %v291 = vsel %vm277, %v255, 0
    %v294 = vsel %vm277, %v256, 0
    %v297 = vsel %vm277, %v257, 0
    %v300 = vsel %vm277, %v258, 0
    %v303 = vsel %vm277, %v259, 0
    %v306 = vsel %vm277, %v260, 0
    %v309 = vsel %vm277, %v261, 0
    %v312 = vsel %vm277, %v262, 0
    %v315 = vsel %vm277, %v263, 0
    %v318 = vsel %vm277, %v264, 0
    %v321 = vsel %vm277, %v265, 0
    %v324 = vsel %vm277, %v266, 0
    %326 = vmatpush.msra.mxu0 0.0
    %327 = vmatpush.msra.mxu0 0.0
    %328 = vmatpush.msra.mxu0 0.0
    %329 = vmatpush.msra.mxu0 0.0
    %330 = vmatpush.msra.mxu0 0.0
    %331 = vmatpush.msra.mxu0 0.0
    %332 = vmatpush.msra.mxu0 0.0
    %333 = vmatpush.msra.mxu0 0.0
    %334 = vmatpush.msra.mxu0 0.0
    %335 = vmatpush.msra.mxu0 0.0
    %336 = vmatpush.msra.mxu0 %v272
    %337 = vmatpush.msra.mxu0 %v271
    %338 = vmatpush.msra.mxu0 %v270
    %339 = vmatpush.msra.mxu0 %v269
    %340 = vmatpush.msra.mxu0 %v268
    %341 = vmatpush.msra.mxu0 %v267
    %342 = vmatmul.f32.gmra.mxu0 %v279
    %v343 = vpop.f32.mrf.mxu0
    %v344 = vadd.f32 %v275, %v343
    %345 = vmatmul.f32.gmra.mxu0 %v282
    %v346 = vpop.f32.mrf.mxu0
    %v347 = vadd.f32 %v275, %v346
    %348 = vmatmul.f32.gmra.mxu0 %v285
    %v349 = vpop.f32.mrf.mxu0
    %v350 = vadd.f32 %v275, %v349
    %351 = vmatmul.f32.gmra.mxu0 %v288
    %v352 = vpop.f32.mrf.mxu0
    %v353 = vadd.f32 %v275, %v352
    %354 = vmatmul.f32.gmra.mxu0 %v291
    %v355 = vpop.f32.mrf.mxu0
    %v356 = vadd.f32 %v275, %v355
    %357 = vmatmul.f32.gmra.mxu0 %v294
    %v358 = vpop.f32.mrf.mxu0
    %v359 = vadd.f32 %v275, %v358
    %360 = vmatmul.f32.gmra.mxu0 %v297
    %v361 = vpop.f32.mrf.mxu0
    %v362 = vadd.f32 %v275, %v361
    %363 = vmatmul.f32.gmra.mxu0 %v300
    %v364 = vpop.f32.mrf.mxu0
    %v365 = vadd.f32 %v275, %v364
    %366 = vmatmul.f32.gmra.mxu0 %v303
    %v367 = vpop.f32.mrf.mxu0
    %v368 = vadd.f32 %v275, %v367
    %369 = vmatmul.f32.gmra.mxu0 %v306
    %v370 = vpop.f32.mrf.mxu0
    %v371 = vadd.f32 %v275, %v370
    %372 = vmatmul.f32.gmra.mxu0 %v309
    %v373 = vpop.f32.mrf.mxu0
    %v374 = vadd.f32 %v275, %v373
    %375 = vmatmul.f32.gmra.mxu0 %v312
    %v376 = vpop.f32.mrf.mxu0
    %v377 = vadd.f32 %v275, %v376
    %378 = vmatmul.f32.gmra.mxu0 %v315
    %v379 = vpop.f32.mrf.mxu0
    %v380 = vadd.f32 %v275, %v379
    %381 = vmatmul.f32.gmra.mxu0 %v318
    %v382 = vpop.f32.mrf.mxu0
    %v383 = vadd.f32 %v275, %v382
    %384 = vmatmul.f32.gmra.mxu0 %v321
    %v385 = vpop.f32.mrf.mxu0
    %v386 = vadd.f32 %v275, %v385
    %387 = vmatmul.f32.gmra.mxu0 %v324
    %v388 = vpop.f32.mrf.mxu0
    %v389 = vadd.f32 %v275, %v388
    %390 = vdwg.mxu0
    %v391 = vmul.f32 %v344, 0.01
    %v392 = vmul.f32 %v347, 0.01
    %v393 = vmul.f32 %v350, 0.01
    %v394 = vmul.f32 %v353, 0.01
    %v395 = vmul.f32 %v356, 0.01
    %v396 = vmul.f32 %v359, 0.01
    %v397 = vmul.f32 %v362, 0.01
    %v398 = vmul.f32 %v365, 0.01
    %v399 = vmul.f32 %v368, 0.01
    %v400 = vmul.f32 %v371, 0.01
    %v401 = vmul.f32 %v374, 0.01
    %v402 = vmul.f32 %v377, 0.01
    %v403 = vmul.f32 %v380, 0.01
    %v404 = vmul.f32 %v383, 0.01
    %v405 = vmul.f32 %v386, 0.01
    %v406 = vmul.f32 %v389, 0.01
    %v407 = vmax.f32 %v344, %v391
    %v408 = vmax.f32 %v347, %v392
    %v409 = vmax.f32 %v350, %v393
    %v410 = vmax.f32 %v353, %v394
    %v411 = vmax.f32 %v356, %v395
    %v412 = vmax.f32 %v359, %v396
    %v413 = vmax.f32 %v362, %v397
    %v414 = vmax.f32 %v365, %v398
    %v415 = vmax.f32 %v368, %v399
    %v416 = vmax.f32 %v371, %v400
    %v417 = vmax.f32 %v374, %v401
    %v418 = vmax.f32 %v377, %v402
    %v419 = vmax.f32 %v380, %v403
    %v420 = vmax.f32 %v383, %v404
    %v421 = vmax.f32 %v386, %v405
    %v422 = vmax.f32 %v389, %v406
    %v423 = vld [vmem:[%s5] sm:$0xff]
    %v424 = vld [vmem:[%s5 + $0x8] sm:$0xff]
    %v425 = vld [vmem:[%s5 + $0x10] sm:$0xff]
    %v426 = vld [vmem:[%s5 + $0x18] sm:$0xff]
    %v427 = vld [vmem:[%s5 + $0x20] sm:$0xff]
    %v428 = vld [vmem:[%s5 + $0x28] sm:$0xff]
    %v430 = vsel %vm277, %v407, 0
    %v433 = vsel %vm277, %v408, 0
    %v436 = vsel %vm277, %v409, 0
    %v439 = vsel %vm277, %v410, 0
    %v442 = vsel %vm277, %v411, 0
    %v445 = vsel %vm277, %v412, 0
    %v448 = vsel %vm277, %v413, 0
    %v451 = vsel %vm277, %v414, 0
    %v454 = vsel %vm277, %v415, 0
    %v457 = vsel %vm277, %v416, 0
    %v460 = vsel %vm277, %v417, 0
    %v463 = vsel %vm277, %v418, 0
    %v466 = vsel %vm277, %v419, 0
    %v469 = vsel %vm277, %v420, 0
    %v472 = vsel %vm277, %v421, 0
    %v475 = vsel %vm277, %v422, 0
    %477 = vmatpush.msra.mxu0 0.0
    %478 = vmatpush.msra.mxu0 0.0
    %479 = vmatpush.msra.mxu0 0.0
    %480 = vmatpush.msra.mxu0 0.0
    %481 = vmatpush.msra.mxu0 0.0
    %482 = vmatpush.msra.mxu0 0.0
    %483 = vmatpush.msra.mxu0 0.0
    %484 = vmatpush.msra.mxu0 0.0
    %485 = vmatpush.msra.mxu0 0.0
    %486 = vmatpush.msra.mxu0 0.0
    %487 = vmatpush.msra.mxu0 %v428
    %488 = vmatpush.msra.mxu0 %v427
    %489 = vmatpush.msra.mxu0 %v426
    %490 = vmatpush.msra.mxu0 %v425
    %491 = vmatpush.msra.mxu0 %v424
    %492 = vmatpush.msra.mxu0 %v423
    %493 = vmatmul.f32.gmra.mxu0 %v430
    %v494 = vpop.f32.mrf.mxu0
    %v495 = vadd.f32 0.0, %v494
    %496 = vmatmul.f32.gmra.mxu0 %v433
    %v497 = vpop.f32.mrf.mxu0
    %v498 = vadd.f32 0.0, %v497
    %499 = vmatmul.f32.gmra.mxu0 %v436
    %v500 = vpop.f32.mrf.mxu0
    %v501 = vadd.f32 0.0, %v500
    %502 = vmatmul.f32.gmra.mxu0 %v439
    %v503 = vpop.f32.mrf.mxu0
    %v504 = vadd.f32 0.0, %v503
    %505 = vmatmul.f32.gmra.mxu0 %v442
    %v506 = vpop.f32.mrf.mxu0
    %v507 = vadd.f32 0.0, %v506
    %508 = vmatmul.f32.gmra.mxu0 %v445
    %v509 = vpop.f32.mrf.mxu0
    %v510 = vadd.f32 0.0, %v509
    %511 = vmatmul.f32.gmra.mxu0 %v448
    %v512 = vpop.f32.mrf.mxu0
    %v513 = vadd.f32 0.0, %v512
    %514 = vmatmul.f32.gmra.mxu0 %v451
    %v515 = vpop.f32.mrf.mxu0
    %v516 = vadd.f32 0.0, %v515
    %517 = vmatmul.f32.gmra.mxu0 %v454
    %v518 = vpop.f32.mrf.mxu0
    %v519 = vadd.f32 0.0, %v518
    %520 = vmatmul.f32.gmra.mxu0 %v457
    %v521 = vpop.f32.mrf.mxu0
    %v522 = vadd.f32 0.0, %v521
    %523 = vmatmul.f32.gmra.mxu0 %v460
    %v524 = vpop.f32.mrf.mxu0
    %v525 = vadd.f32 0.0, %v524
    %526 = vmatmul.f32.gmra.mxu0 %v463
    %v527 = vpop.f32.mrf.mxu0
    %v528 = vadd.f32 0.0, %v527
    %529 = vmatmul.f32.gmra.mxu0 %v466
    %v530 = vpop.f32.mrf.mxu0
    %v531 = vadd.f32 0.0, %v530
    %532 = vmatmul.f32.gmra.mxu0 %v469
    %v533 = vpop.f32.mrf.mxu0
    %v534 = vadd.f32 0.0, %v533
    %535 = vmatmul.f32.gmra.mxu0 %v472
    %v536 = vpop.f32.mrf.mxu0
    %v537 = vadd.f32 0.0, %v536
    %538 = vmatmul.f32.gmra.mxu0 %v475
    %v539 = vpop.f32.mrf.mxu0
    %v540 = vadd.f32 0.0, %v539
    %541 = vdwg.mxu0
    %542 = vst.msk [vmem:[%s6] sm:$0xff] %vm277, %v495
    %543 = vst.msk [vmem:[%s6 + $0x8] sm:$0xff] %vm277, %v498
    %544 = vst.msk [vmem:[%s6 + $0x10] sm:$0xff] %vm277, %v501
    %545 = vst.msk [vmem:[%s6 + $0x18] sm:$0xff] %vm277, %v504
    %546 = vst.msk [vmem:[%s6 + $0x20] sm:$0xff] %vm277, %v507
    %547 = vst.msk [vmem:[%s6 + $0x28] sm:$0xff] %vm277, %v510
    %548 = vst.msk [vmem:[%s6 + $0x30] sm:$0xff] %vm277, %v513
    %549 = vst.msk [vmem:[%s6 + $0x38] sm:$0xff] %vm277, %v516
    %550 = vst.msk [vmem:[%s6 + $0x40] sm:$0xff] %vm277, %v519
    %551 = vst.msk [vmem:[%s6 + $0x48] sm:$0xff] %vm277, %v522
    %552 = vst.msk [vmem:[%s6 + $0x50] sm:$0xff] %vm277, %v525
    %553 = vst.msk [vmem:[%s6 + $0x58] sm:$0xff] %vm277, %v528
    %554 = vst.msk [vmem:[%s6 + $0x60] sm:$0xff] %vm277, %v531
    %555 = vst.msk [vmem:[%s6 + $0x68] sm:$0xff] %vm277, %v534
    %556 = vst.msk [vmem:[%s6 + $0x70] sm:$0xff] %vm277, %v537
    %557 = vst.msk [vmem:[%s6 + $0x78] sm:$0xff] %vm277, %v540
    // Predicated region
    $region30: #{tpu_custom_call.1} parent=1 // pred_check
      _
    $region31: #{tpu_custom_call.1} parent=1 // pred_check_branch
      %559 = sbr.rel (0) target = $region33
    $region32: #{tpu_custom_call.1} parent=1 // pred_region
      _
    $region33: #{tpu_custom_call.1} parent=1 // pred_fallthru
      _
    // Predicated region
    $region34: #{tpu_custom_call.1} parent=1 // pred_check
      _
    $region35: #{tpu_custom_call.1} parent=1 // pred_check_branch
      %561 = sbr.rel (0) target = $region37
    $region36: #{tpu_custom_call.1} parent=1 // pred_region
      _
    $region37: #{tpu_custom_call.1} parent=1 // pred_fallthru
      _
    %562 = vsyncpa [#allocation3], 1

</llo_original>
